<compile_context>
chip_gen: v7x
topology: tpu7x:2x2x1
jax: 0.10.0
libtpu: 0.0.40
codegen_flags: <defaults>
</compile_context>

<pallas_src>
import functools

import jax
import jax.numpy as jnp
from jax.experimental import pallas as pl
from jax.experimental.pallas import tpu as pltpu

_SUBLANE = 8
_LANE = 128


def _std_partial_kernel(x_ref, sum_ref, sq_ref, *, fold):
    """Accumulate per-slice vector partial sums / sums of squares.

    grid = (P, T): axis 0 ("parallel") indexes independent row slices (one per
    TensorCore on v7x megacore); axis 1 ("arbitrary") walks the row tiles of
    that slice.  The two outputs are resident (1, 8, C) accumulators: per tile
    we only fold the leading (sublane-group) axis with plain VPU adds; the one
    cross-lane reduction happens once, outside the kernel.
    """
    @pl.when(pl.program_id(1) == 0)
    def _init():
        sum_ref[...] = jnp.zeros_like(sum_ref)
        sq_ref[...] = jnp.zeros_like(sq_ref)

    x = x_ref[...]                                  # (tm, C) float32
    xs = x.reshape(fold, _SUBLANE, x.shape[-1])     # split sublane groups
    sum_ref[...] += jnp.sum(xs, axis=0)[None]       # (1, 8, C)
    sq_ref[...] += jnp.sum(xs * xs, axis=0)[None]   # (1, 8, C)


def _std_whole_kernel(x_ref, out_ref, *, n):
    """No-grid fallback for tiny or non-(8,128)-aligned shapes."""
    x = x_ref[...].astype(jnp.float32)
    s = jnp.sum(x)
    ss = jnp.sum(x * x)
    mean = s / n
    var = (ss - n * mean * mean) / (n - 1.0)
    out_ref[0, 0] = jnp.sqrt(jnp.maximum(var, 0.0))


def _pallas_std(a2d):
    """Unbiased (Bessel-corrected) std of a 2-D float32 array via Pallas."""
    rows, cols = a2d.shape
    n = rows * cols
    assert n > 1

    aligned = (rows % _SUBLANE == 0) and (cols % _LANE == 0)
    if (n <= 64 * 1024) or not aligned:
        # Tiny / unaligned shapes: single full-array block, scalar out in SMEM.
        out = pl.pallas_call(
            functools.partial(_std_whole_kernel, n=float(n)),
            out_shape=jax.ShapeDtypeStruct((1, 1), jnp.float32),
            out_specs=pl.BlockSpec(memory_space=pltpu.SMEM),
        )(a2d)
        return out[0, 0]

    # Row-tile size: largest multiple-of-8 divisor of `rows` keeping one f32
    # tile <= ~1 MiB (fits easily in v7x's 32 MiB scoped VMEM with double
    # buffering, while giving several grid steps per core for pipelining).
    max_tile_bytes = 1 * 1024 * 1024
    tm = _SUBLANE
    for cand in (1024, 512, 256, 128, 64, 32, 16, 8):
        if rows % cand == 0 and cand * cols * 4 <= max_tile_bytes:
            tm = cand
            break
    n_tiles = rows // tm
    num_par = 2 if n_tiles % 2 == 0 else 1        # 2 slices -> both v7x TCs
    tiles_per_par = n_tiles // num_par

    kernel = functools.partial(_std_partial_kernel, fold=tm // _SUBLANE)
    acc_spec = pl.BlockSpec((1, _SUBLANE, cols), lambda p, t: (p, 0, 0))
    psum, psq = pl.pallas_call(
        kernel,
        grid=(num_par, tiles_per_par),
        in_specs=[pl.BlockSpec((tm, cols),
                               lambda p, t: (p * tiles_per_par + t, 0))],
        out_specs=[acc_spec, acc_spec],
        out_shape=[jax.ShapeDtypeStruct((num_par, _SUBLANE, cols), jnp.float32),
                   jax.ShapeDtypeStruct((num_par, _SUBLANE, cols), jnp.float32)],
        compiler_params=pltpu.CompilerParams(
            dimension_semantics=("parallel", "arbitrary"),
            vmem_limit_bytes=32 * 1024 * 1024),
    )(a2d)

    # Tiny final combine (per-core partials) + Bessel-corrected variance.
    nf = jnp.float32(n)
    s = jnp.sum(psum)
    ss = jnp.sum(psq)
    mean = s / nf
    var = (ss - nf * mean * mean) / (nf - jnp.float32(1.0))
    return jnp.sqrt(jnp.maximum(var, jnp.float32(0.0)))


def randn_std(key, shape=(4, 512, 1024)):
    """Equivalent of RandnDtypeDeviceModule.forward(): std of randn(shape)."""
    # TODO(synk): aten.randn requests float64; TPU/Pallas has no f64, so the
    # normals and the reduction run in float32.
    # TODO(synk): in-kernel PRNG (pltpu.prng_seed/prng_random_bits) does not
    # lower in the CPU/interpret harness, so the standard-normal draw is done
    # with jax.random.normal and only the std reduction is the Pallas kernel.
    a = jax.random.normal(key, shape, dtype=jnp.float32)
    return _pallas_std(a.reshape(-1, shape[-1]))


if __name__ == "__main__":
    key = jax.random.PRNGKey(0)

    # Main path: exact module shape [4, 512, 1024] (tiled, gridded kernel).
    a = jax.random.normal(key, (4, 512, 1024), dtype=jnp.float32)
    std = _pallas_std(a.reshape(-1, a.shape[-1]))
    std = jax.block_until_ready(std)

    assert std.dtype == jnp.float32
    # Sample std of ~2M standard normals must be ~1 (std-error ~5e-4).
    assert 0.95 < float(std) < 1.05, f"unexpected std {float(std)}"
    # Cross-check against the XLA reference reduction.
    ref = jnp.std(a, ddof=1)
    assert abs(float(std) - float(ref)) < 1e-3, (float(std), float(ref))

    # Fallback path sanity check (unaligned last dim -> single-block kernel).
    key2 = jax.random.PRNGKey(1)
    small = jax.random.normal(key2, (16, 96), dtype=jnp.float32)
    std_small = jax.block_until_ready(_pallas_std(small))
    ref_small = jnp.std(small, ddof=1)
    assert abs(float(std_small) - float(ref_small)) < 1e-3

    print("KERNEL_OK")
</pallas_src>

<mosaic_0001>
module attributes {stable_mosaic.version = 11 : i64} {
  func.func @_std_partial_kernel(%arg0: i32, %arg1: i32, %arg2: memref<256x1024xf32, #tpu.memory_space<vmem>>, %arg3: memref<1x8x1024xf32, #tpu.memory_space<vmem>>, %arg4: memref<1x8x1024xf32, #tpu.memory_space<vmem>>) attributes {dimension_semantics = [#tpu.dimension_semantics<parallel>, #tpu.dimension_semantics<arbitrary>], iteration_bounds = array<i64: 2, 4>, scalar_prefetch = 0 : i64, scratch_operands = 0 : i64, tpu.core_type = #tpu.core_type<tc>, window_params = [{transform_indices = @transform_0, window_bounds = array<i64: 256, 1024>}, {transform_indices = @transform_1, window_bounds = array<i64: 1, 8, 1024>}, {transform_indices = @transform_2, window_bounds = array<i64: 1, 8, 1024>}]} {
    %c0_i32 = arith.constant 0 : i32
    %0 = arith.cmpi eq, %arg1, %c0_i32 : i32
    %1 = arith.extui %0 : i1 to i32
    %c0_i32_0 = arith.constant 0 : i32
    %2 = arith.cmpi ne, %1, %c0_i32_0 : i32
    scf.if %2 {
      %cst_15 = arith.constant 0.000000e+00 : f32
      %16 = vector.broadcast %cst_15 : f32 to vector<1x8x1024xf32>
      %c0_16 = arith.constant 0 : index
      %c0_17 = arith.constant 0 : index
      %c0_18 = arith.constant 0 : index
      %17 = vector.load %arg3[%c0_16, %c0_17, %c0_18] : memref<1x8x1024xf32, #tpu.memory_space<vmem>>, vector<1x8x1024xf32>
      tpu.vector_store %arg3[%c0_16, %c0_17, %c0_18], %16 {strides = array<i32>} : memref<1x8x1024xf32, #tpu.memory_space<vmem>>, vector<1x8x1024xf32>,
      %cst_19 = arith.constant 0.000000e+00 : f32
      %18 = vector.broadcast %cst_19 : f32 to vector<1x8x1024xf32>
      %c0_20 = arith.constant 0 : index
      %c0_21 = arith.constant 0 : index
      %c0_22 = arith.constant 0 : index
      %19 = vector.load %arg4[%c0_20, %c0_21, %c0_22] : memref<1x8x1024xf32, #tpu.memory_space<vmem>>, vector<1x8x1024xf32>
      tpu.vector_store %arg4[%c0_20, %c0_21, %c0_22], %18 {strides = array<i32>} : memref<1x8x1024xf32, #tpu.memory_space<vmem>>, vector<1x8x1024xf32>,
    } else {
    }
    %c0 = arith.constant 0 : index
    %c0_1 = arith.constant 0 : index
    %3 = vector.load %arg2[%c0, %c0_1] : memref<256x1024xf32, #tpu.memory_space<vmem>>, vector<256x1024xf32>
    %4 = vector.shape_cast %3 : vector<256x1024xf32> to vector<32x8x1024xf32>
    %c0_2 = arith.constant 0 : index
    %c0_3 = arith.constant 0 : index
    %c0_4 = arith.constant 0 : index
    %5 = vector.load %arg3[%c0_2, %c0_3, %c0_4] : memref<1x8x1024xf32, #tpu.memory_space<vmem>>, vector<1x8x1024xf32>
    %cst = arith.constant dense<0.000000e+00> : vector<8x1024xf32>
    %6 = vector.multi_reduction <add>, %4, %cst [0] : vector<32x8x1024xf32> to vector<8x1024xf32>
    %7 = vector.shape_cast %6 : vector<8x1024xf32> to vector<1x8x1024xf32>
    %8 = arith.addf %5, %7 : vector<1x8x1024xf32>
    %c0_5 = arith.constant 0 : index
    %c0_6 = arith.constant 0 : index
    %c0_7 = arith.constant 0 : index
    %9 = vector.load %arg3[%c0_5, %c0_6, %c0_7] : memref<1x8x1024xf32, #tpu.memory_space<vmem>>, vector<1x8x1024xf32>
    tpu.vector_store %arg3[%c0_5, %c0_6, %c0_7], %8 {strides = array<i32>} : memref<1x8x1024xf32, #tpu.memory_space<vmem>>, vector<1x8x1024xf32>,
    %c0_8 = arith.constant 0 : index
    %c0_9 = arith.constant 0 : index
    %c0_10 = arith.constant 0 : index
    %10 = vector.load %arg4[%c0_8, %c0_9, %c0_10] : memref<1x8x1024xf32, #tpu.memory_space<vmem>>, vector<1x8x1024xf32>
    %11 = arith.mulf %4, %4 : vector<32x8x1024xf32>
    %cst_11 = arith.constant dense<0.000000e+00> : vector<8x1024xf32>
    %12 = vector.multi_reduction <add>, %11, %cst_11 [0] : vector<32x8x1024xf32> to vector<8x1024xf32>
    %13 = vector.shape_cast %12 : vector<8x1024xf32> to vector<1x8x1024xf32>
    %14 = arith.addf %10, %13 : vector<1x8x1024xf32>
    %c0_12 = arith.constant 0 : index
    %c0_13 = arith.constant 0 : index
    %c0_14 = arith.constant 0 : index
    %15 = vector.load %arg4[%c0_12, %c0_13, %c0_14] : memref<1x8x1024xf32, #tpu.memory_space<vmem>>, vector<1x8x1024xf32>
    tpu.vector_store %arg4[%c0_12, %c0_13, %c0_14], %14 {strides = array<i32>} : memref<1x8x1024xf32, #tpu.memory_space<vmem>>, vector<1x8x1024xf32>,
    return
  }
  func.func @transform_0(%arg0: i32, %arg1: i32) -> (i32, i32) {
    %c4_i32 = arith.constant 4 : i32
    %0 = arith.muli %arg0, %c4_i32 : i32
    %1 = arith.addi %0, %arg1 : i32
    %c0_i32 = arith.constant 0 : i32
    %c0_i32_0 = arith.constant 0 : i32
    return %1, %c0_i32 : i32, i32
  }
  func.func @transform_1(%arg0: i32, %arg1: i32) -> (i32, i32, i32) {
    %c0_i32 = arith.constant 0 : i32
    %c0_i32_0 = arith.constant 0 : i32
    %c0_i32_1 = arith.constant 0 : i32
    return %arg0, %c0_i32, %c0_i32_0 : i32, i32, i32
  }
  func.func @transform_2(%arg0: i32, %arg1: i32) -> (i32, i32, i32) {
    %c0_i32 = arith.constant 0 : i32
    %c0_i32_0 = arith.constant 0 : i32
    %c0_i32_1 = arith.constant 0 : i32
    return %arg0, %c0_i32, %c0_i32_0 : i32, i32, i32
  }
}

</mosaic_0001>

<llo_original>
// kernel: tpu_custom_call.1
$region0: #{tpu_custom_call.1}
  #allocation0 [shape = 'u32[]', space=smem, size = 0x4, offset = 0x4, fixed_abs, tag = 'smem constant byte address 0x4 - core index']
  #allocation1 [shape = 'u32[144,128]{1,0:T(1,128)}', space=vmem, size = 0x12000, scoped, tag = 'internal scratch']
  %s0 = inlined_call_operand.hbm [shape: f32[2048,1024], index: 0, kind: input, shape index: {}]
  %s1 = inlined_call_operand.hbm [shape: f32[2,8,1024], index: 1, kind: output, shape index: {0}]
  %s2 = inlined_call_operand.hbm [shape: f32[2,8,1024], index: 2, kind: output, shape index: {1}]
  %3 = xla_tuple %s1, %s2
  %s4 = sld [smem:[#allocation0]]
  $region53: #{tpu_custom_call.1} parent=0
    _
  %s6 = ssub.s32 1, %s4
  %s7 = scalar_select 0, %s6, %s4
  $region1: #{tpu_custom_call.1} parent=0
    #allocation2 [shape = 'u8[2097152]{0}', space=vmem, size = 0x200000, scoped, tag = 'input window, operand 0']
    #allocation3 [shape = 's32[2]{0}', space=sflag, size = 0x8, scoped, tag = 'scoped memory for tpu_custom_call.1']
    #allocation4 [shape = 's32[2]{0}', space=sflag, size = 0x8, scoped, tag = 'scoped memory for tpu_custom_call.1']
    #allocation5 [shape = 'u8[65536]{0}', space=vmem, size = 0x10000, scoped, tag = 'output window, operand 0']
    #allocation6 [shape = 'u8[65536]{0}', space=vmem, size = 0x10000, scoped, tag = 'output window, operand 1']
    #allocation7 [shape = 's32[2]{0}', space=sflag, size = 0x8, scoped, tag = 'scoped memory for tpu_custom_call.1']
    %8 = vsyncpa [#allocation3], 0
    %s9 = scalar_lea.sflag [#allocation3], 1
    %10 = vsyncpa %s9, 0
    %11 = vsyncpa [#allocation4], 0
    %s12 = scalar_lea.sflag [#allocation4], 1
    %13 = vsyncpa %s12, 0
    %14 = vsyncpa [#allocation7], 0
    %s15 = scalar_lea.sflag [#allocation7], 1
    %16 = vsyncpa %s15, 0
    loop: start=0, step=1, limit=10
    $region2: #{tpu_custom_call.1} parent=1 // loop_pre_header
      _
    $region3: #{tpu_custom_call.1} parent=1 // loop_header
      %s18 = sphi 0, %s22
      %p19 = scmp.ge.s32.totalorder %s18, 10
      %s25 = sphi 0, %s37
      %s26 = sphi 0, %s33
      %s27 = sphi 0, %s25
      %s28 = sphi 0, %s26
      %s29 = sphi 0, %s27
      %s30 = sphi 0, %s28
      %s44 = sphi 0, %s46
      %s47 = sphi 0, %s44
      %s48 = sphi 0, %s47
      %s64 = sphi 0, %s48
      %s70 = sphi 0, %s72
      %s73 = sphi 0, %s70
      %s74 = sphi 0, %s73
      %s90 = sphi 0, %s74
      %s96 = sphi 0, %s98
      %s99 = sphi 0, %s96
      %s100 = sphi 0, %s99
      %s116 = sphi 0, %s100
    $region4: #{tpu_custom_call.1} parent=1 // loop_header_branch
      %21 = sbr.rel (%p19) target = $region8
    $region5: #{tpu_custom_call.1} parent=1 // loop_body
      %s23 = ssub.s32 %s18, 1
      %s24 = ssub.s32 %s18, 2
      %s31 = sadd.s32 1, %s26
      %p32 = scmp.ge.s32.totalorder %s31, 4
      %s33 = scalar_select %p32, 0, %s31
      %s34 = sadd.s32 1, %s25
      %s35 = scalar_select %p32, %s34, %s25
      %p36 = scmp.ge.s32.totalorder %s35, 2
      %s37 = scalar_select %p36, 0, %s35
      %s38 = smul.u32 %s25, 4
      %s39 = sadd.s32 %s38, %s26
      %s40 = smul.u32 %s37, 4
      %s41 = sadd.s32 %s40, %s33
      %s42 = ssub.s32 %s39, %s41
      %p43 = scmp.eq.s32.totalorder %s42, 0
      %s45 = sadd.s32 %s44, 1
      %s46 = scalar_select %p43, %s44, %s45
      %p49 = pneg %p43
      %p50 = scmp.eq.s32.totalorder %s18, 7
      %p51 = por %p49, %p50
      %p52 = scmp.ne.s32.totalorder %s44, %s47
      %p53 = scmp.eq.s32.totalorder %s18, 0
      %p54 = por %p52, %p53
      %p55 = scmp.ne.s32.totalorder %s44, %s47
      %p56 = scmp.eq.s32.totalorder %s23, 7
      %p57 = por %p55, %p56
      %p58 = scmp.ne.s32.totalorder %s47, %s48
      %p59 = scmp.eq.s32.totalorder %s23, 0
      %p60 = por %p58, %p59
      %p61 = scmp.ne.s32.totalorder %s47, %s48
      %p62 = scmp.eq.s32.totalorder %s24, 7
      %p63 = por %p61, %p62
      %p65 = scmp.ne.s32.totalorder %s48, %s64
      %p66 = scmp.eq.s32.totalorder %s24, 0
      %p67 = por %p65, %p66
      %s68 = ssub.s32 %s25, %s37
      %p69 = scmp.eq.s32.totalorder %s68, 0
      %s71 = sadd.s32 %s70, 1
      %s72 = scalar_select %p69, %s70, %s71
      %p75 = pneg %p69
      %p76 = scmp.eq.s32.totalorder %s18, 7
      %p77 = por %p75, %p76
      %p78 = scmp.ne.s32.totalorder %s70, %s73
      %p79 = scmp.eq.s32.totalorder %s18, 0
      %p80 = por %p78, %p79
      %p81 = scmp.ne.s32.totalorder %s70, %s73
      %p82 = scmp.eq.s32.totalorder %s23, 7
      %p83 = por %p81, %p82
      %p84 = scmp.ne.s32.totalorder %s73, %s74
      %p85 = scmp.eq.s32.totalorder %s23, 0
      %p86 = por %p84, %p85
      %p87 = scmp.ne.s32.totalorder %s73, %s74
      %p88 = scmp.eq.s32.totalorder %s24, 7
      %p89 = por %p87, %p88
      %p91 = scmp.ne.s32.totalorder %s74, %s90
      %p92 = scmp.eq.s32.totalorder %s24, 0
      %p93 = por %p91, %p92
      %s94 = ssub.s32 %s25, %s37
      %p95 = scmp.eq.s32.totalorder %s94, 0
      %s97 = sadd.s32 %s96, 1
      %s98 = scalar_select %p95, %s96, %s97
      %p101 = pneg %p95
      %p102 = scmp.eq.s32.totalorder %s18, 7
      %p103 = por %p101, %p102
      %p104 = scmp.ne.s32.totalorder %s96, %s99
      %p105 = scmp.eq.s32.totalorder %s18, 0
      %p106 = por %p104, %p105
      %p107 = scmp.ne.s32.totalorder %s96, %s99
      %p108 = scmp.eq.s32.totalorder %s23, 7
      %p109 = por %p107, %p108
      %p110 = scmp.ne.s32.totalorder %s99, %s100
      %p111 = scmp.eq.s32.totalorder %s23, 0
      %p112 = por %p110, %p111
      %p113 = scmp.ne.s32.totalorder %s99, %s100
      %p114 = scmp.eq.s32.totalorder %s24, 7
      %p115 = por %p113, %p114
      %p117 = scmp.ne.s32.totalorder %s100, %s116
      %p118 = scmp.eq.s32.totalorder %s24, 0
      %p119 = por %p117, %p118
      %p120 = scmp.le.s32.totalorder 1, %s18
      %p121 = scmp.lt.s32.totalorder %s18, 9
      %p122 = pnand %p120, %p121
      %p123 = pneg %p122
      // Predicated region
      $region9: #{tpu_custom_call.1} parent=5 // pred_check
        _
      $region10: #{tpu_custom_call.1} parent=5 // pred_check_branch
        %125 = sbr.rel (%p122) target = $region12
      $region11: #{tpu_custom_call.1} parent=5 // pred_region
        %s126 = ssub.s32 %s18, 1
      $region12: #{tpu_custom_call.1} parent=5 // pred_fallthru
        _
      %p127 = scmp.lt.s32.totalorder %s18, 8
      // Predicated region
      $region13: #{tpu_custom_call.1} parent=5 // pred_check
        %p128 = pneg %p127
      $region14: #{tpu_custom_call.1} parent=5 // pred_check_branch
        %130 = sbr.rel (%p128) target = $region16
      $region15: #{tpu_custom_call.1} parent=5 // pred_region
        // Predicated region
        $region17: #{tpu_custom_call.1} parent=15 // pred_check
          %p131 = pneg %p54
        $region18: #{tpu_custom_call.1} parent=15 // pred_check_branch
          %133 = sbr.rel (%p131) target = $region20
        $region19: #{tpu_custom_call.1} parent=15 // pred_region
          %s134 = sand.u32 %s44, 1
          %s135 = scalar_lea.sflag [#allocation3], %s134
          %s136 = sand.u32 %s44, 1
          %s137 = smul.addr %s136, 2048
          %s138 = scalar_lea.vmem [#allocation2], %s137
          %s139 = smul.u32 %s25, 4
          %s140 = sadd.s32 %s139, %s26
          %s141 = smul.u32 32, %s140
          %s143 = ssub.s32 32768, 32768
          %144 = vsyncadd %s135, %s143
          %s145 = smul.addr %s141, 8
          %s146 = smul.addr %s145, 128
          %s147 = scalar_lea.hbm %s0, %s146
          %s148 = sshll.u32 %s138, 4
          %s149 = int_to_ptr.vmem [resolvable:$true] %s148
          %154 = dma.hbm_to_vmem [thread:$0]  %s147, 32768, %s149, %s135, 1024, 1024, 64
        $region20: #{tpu_custom_call.1} parent=15 // pred_fallthru
          _
      $region16: #{tpu_custom_call.1} parent=5 // pred_fallthru
        _
      %p155 = scmp.le.s32.totalorder 1, %s18
      %p156 = scmp.lt.s32.totalorder %s18, 9
      %p157 = pnand %p155, %p156
      %p158 = pneg %p157
      // Predicated region
      $region21: #{tpu_custom_call.1} parent=5 // pred_check
        _
      $region22: #{tpu_custom_call.1} parent=5 // pred_check_branch
        %160 = sbr.rel (%p157) target = $region24
      $region23: #{tpu_custom_call.1} parent=5 // pred_region
        %s161 = ssub.s32 %s18, 1
        %s162 = sand.u32 %s47, 1
        %s163 = scalar_lea.sflag [#allocation3], %s162
        %s164 = sand.u32 %s47, 1
        %s165 = smul.addr %s164, 2048
        %s166 = scalar_lea.vmem [#allocation2], %s165
        // Predicated region
        $region25: #{tpu_custom_call.1} parent=23 // pred_check
          %p167 = pneg %p60
        $region26: #{tpu_custom_call.1} parent=23 // pred_check_branch
          %169 = sbr.rel (%p167) target = $region28
        $region27: #{tpu_custom_call.1} parent=23 // pred_region
          %170 = dma.done %s163, 32768
        $region28: #{tpu_custom_call.1} parent=23 // pred_fallthru
          _
        %s171 = sand.u32 %s47, 1
        %s172 = scalar_lea.sflag [#allocation3], %s171
        %s173 = sand.u32 %s47, 1
        %s174 = smul.addr %s173, 2048
        %s175 = scalar_lea.vmem [#allocation2], %s174
        %p176 = pneg %p60
        %p177 = pneg %p57
        %p178 = pneg %p86
        %p179 = pneg %p83
        %s180 = sand.u32 %s73, 1
        %s181 = scalar_lea.sflag [#allocation4], %s180
        %s182 = sand.u32 %s73, 1
        %s183 = smul.addr %s182, 64
        %s184 = scalar_lea.vmem [#allocation5], %s183
        %p185 = pneg %p112
        %p186 = pneg %p109
        %s187 = sand.u32 %s99, 1
        %s188 = scalar_lea.sflag [#allocation7], %s187
        %s189 = sand.u32 %s99, 1
        %s190 = smul.addr %s189, 64
        %s191 = scalar_lea.vmem [#allocation6], %s190
        %s192 = smul.u32 %s27, 4
        %s193 = sadd.s32 %s192, %s28
        %s194 = smul.u32 32, %s193
        %p195 = scmp.eq.s32.totalorder %s28, 0
        // Predicated region
        $region29: #{tpu_custom_call.1} parent=23 // pred_check
          %p196 = pneg %p195
        $region30: #{tpu_custom_call.1} parent=23 // pred_check_branch
          %198 = sbr.rel (%p196) target = $region32
        $region31: #{tpu_custom_call.1} parent=23 // pred_region
          %199 = vst [vmem:[%s184] sm:$0xff] 0.0
          %200 = vst [vmem:[%s184 + $0x8] sm:$0xff] 0.0
          %201 = vst [vmem:[%s184 + $0x10] sm:$0xff] 0.0
          %202 = vst [vmem:[%s184 + $0x18] sm:$0xff] 0.0
          %203 = vst [vmem:[%s184 + $0x20] sm:$0xff] 0.0
          %204 = vst [vmem:[%s184 + $0x28] sm:$0xff] 0.0
          %205 = vst [vmem:[%s184 + $0x30] sm:$0xff] 0.0
          %206 = vst [vmem:[%s184 + $0x38] sm:$0xff] 0.0
          %207 = vst [vmem:[%s191] sm:$0xff] 0.0
          %208 = vst [vmem:[%s191 + $0x8] sm:$0xff] 0.0
          %209 = vst [vmem:[%s191 + $0x10] sm:$0xff] 0.0
          %210 = vst [vmem:[%s191 + $0x18] sm:$0xff] 0.0
          %211 = vst [vmem:[%s191 + $0x20] sm:$0xff] 0.0
          %212 = vst [vmem:[%s191 + $0x28] sm:$0xff] 0.0
          %213 = vst [vmem:[%s191 + $0x30] sm:$0xff] 0.0
          %214 = vst [vmem:[%s191 + $0x38] sm:$0xff] 0.0
        $region32: #{tpu_custom_call.1} parent=23 // pred_fallthru
          _
        %v215 = vld [vmem:[%s166] sm:$0xff]
        %v216 = vld [vmem:[%s166 + $0x8] sm:$0xff]
        %v217 = vld [vmem:[%s166 + $0x10] sm:$0xff]
        %v218 = vld [vmem:[%s166 + $0x18] sm:$0xff]
        %v219 = vld [vmem:[%s166 + $0x20] sm:$0xff]
        %v220 = vld [vmem:[%s166 + $0x28] sm:$0xff]
        %v221 = vld [vmem:[%s166 + $0x30] sm:$0xff]
        %v222 = vld [vmem:[%s166 + $0x38] sm:$0xff]
        %v223 = vld [vmem:[%s166 + $0x40] sm:$0xff]
        %v224 = vld [vmem:[%s166 + $0x48] sm:$0xff]
        %v225 = vld [vmem:[%s166 + $0x50] sm:$0xff]
        %v226 = vld [vmem:[%s166 + $0x58] sm:$0xff]
        %v227 = vld [vmem:[%s166 + $0x60] sm:$0xff]
        %v228 = vld [vmem:[%s166 + $0x68] sm:$0xff]
        %v229 = vld [vmem:[%s166 + $0x70] sm:$0xff]
        %v230 = vld [vmem:[%s166 + $0x78] sm:$0xff]
        %v231 = vld [vmem:[%s166 + $0x80] sm:$0xff]
        %v232 = vld [vmem:[%s166 + $0x88] sm:$0xff]
        %v233 = vld [vmem:[%s166 + $0x90] sm:$0xff]
        %v234 = vld [vmem:[%s166 + $0x98] sm:$0xff]
        %v235 = vld [vmem:[%s166 + $0xa0] sm:$0xff]
        %v236 = vld [vmem:[%s166 + $0xa8] sm:$0xff]
        %v237 = vld [vmem:[%s166 + $0xb0] sm:$0xff]
        %v238 = vld [vmem:[%s166 + $0xb8] sm:$0xff]
        %v239 = vld [vmem:[%s166 + $0xc0] sm:$0xff]
        %v240 = vld [vmem:[%s166 + $0xc8] sm:$0xff]
        %v241 = vld [vmem:[%s166 + $0xd0] sm:$0xff]
        %v242 = vld [vmem:[%s166 + $0xd8] sm:$0xff]
        %v243 = vld [vmem:[%s166 + $0xe0] sm:$0xff]
        %v244 = vld [vmem:[%s166 + $0xe8] sm:$0xff]
        %v245 = vld [vmem:[%s166 + $0xf0] sm:$0xff]
        %v246 = vld [vmem:[%s166 + $0xf8] sm:$0xff]
        %v247 = vld [vmem:[%s166 + $0x100] sm:$0xff]
        %v248 = vld [vmem:[%s166 + $0x108] sm:$0xff]
        %v249 = vld [vmem:[%s166 + $0x110] sm:$0xff]
        %v250 = vld [vmem:[%s166 + $0x118] sm:$0xff]
        %v251 = vld [vmem:[%s166 + $0x120] sm:$0xff]
        %v252 = vld [vmem:[%s166 + $0x128] sm:$0xff]
        %v253 = vld [vmem:[%s166 + $0x130] sm:$0xff]
        %v254 = vld [vmem:[%s166 + $0x138] sm:$0xff]
        %v255 = vld [vmem:[%s166 + $0x140] sm:$0xff]
        %v256 = vld [vmem:[%s166 + $0x148] sm:$0xff]
        %v257 = vld [vmem:[%s166 + $0x150] sm:$0xff]
        %v258 = vld [vmem:[%s166 + $0x158] sm:$0xff]
        %v259 = vld [vmem:[%s166 + $0x160] sm:$0xff]
        %v260 = vld [vmem:[%s166 + $0x168] sm:$0xff]
        %v261 = vld [vmem:[%s166 + $0x170] sm:$0xff]
        %v262 = vld [vmem:[%s166 + $0x178] sm:$0xff]
        %v263 = vld [vmem:[%s166 + $0x180] sm:$0xff]
        %v264 = vld [vmem:[%s166 + $0x188] sm:$0xff]
        %v265 = vld [vmem:[%s166 + $0x190] sm:$0xff]
        %v266 = vld [vmem:[%s166 + $0x198] sm:$0xff]
        %v267 = vld [vmem:[%s166 + $0x1a0] sm:$0xff]
        %v268 = vld [vmem:[%s166 + $0x1a8] sm:$0xff]
        %v269 = vld [vmem:[%s166 + $0x1b0] sm:$0xff]
        %v270 = vld [vmem:[%s166 + $0x1b8] sm:$0xff]
        %v271 = vld [vmem:[%s166 + $0x1c0] sm:$0xff]
        %v272 = vld [vmem:[%s166 + $0x1c8] sm:$0xff]
        %v273 = vld [vmem:[%s166 + $0x1d0] sm:$0xff]
        %v274 = vld [vmem:[%s166 + $0x1d8] sm:$0xff]
        %v275 = vld [vmem:[%s166 + $0x1e0] sm:$0xff]
        %v276 = vld [vmem:[%s166 + $0x1e8] sm:$0xff]
        %v277 = vld [vmem:[%s166 + $0x1f0] sm:$0xff]
        %v278 = vld [vmem:[%s166 + $0x1f8] sm:$0xff]
        %v279 = vld [vmem:[%s166 + $0x200] sm:$0xff]
        %v280 = vld [vmem:[%s166 + $0x208] sm:$0xff]
        %v281 = vld [vmem:[%s166 + $0x210] sm:$0xff]
        %v282 = vld [vmem:[%s166 + $0x218] sm:$0xff]
        %v283 = vld [vmem:[%s166 + $0x220] sm:$0xff]
        %v284 = vld [vmem:[%s166 + $0x228] sm:$0xff]
        %v285 = vld [vmem:[%s166 + $0x230] sm:$0xff]
        %v286 = vld [vmem:[%s166 + $0x238] sm:$0xff]
        %v287 = vld [vmem:[%s166 + $0x240] sm:$0xff]
        %v288 = vld [vmem:[%s166 + $0x248] sm:$0xff]
        %v289 = vld [vmem:[%s166 + $0x250] sm:$0xff]
        %v290 = vld [vmem:[%s166 + $0x258] sm:$0xff]
        %v291 = vld [vmem:[%s166 + $0x260] sm:$0xff]
        %v292 = vld [vmem:[%s166 + $0x268] sm:$0xff]
        %v293 = vld [vmem:[%s166 + $0x270] sm:$0xff]
        %v294 = vld [vmem:[%s166 + $0x278] sm:$0xff]
        %v295 = vld [vmem:[%s166 + $0x280] sm:$0xff]
        %v296 = vld [vmem:[%s166 + $0x288] sm:$0xff]
        %v297 = vld [vmem:[%s166 + $0x290] sm:$0xff]
        %v298 = vld [vmem:[%s166 + $0x298] sm:$0xff]
        %v299 = vld [vmem:[%s166 + $0x2a0] sm:$0xff]
        %v300 = vld [vmem:[%s166 + $0x2a8] sm:$0xff]
        %v301 = vld [vmem:[%s166 + $0x2b0] sm:$0xff]
        %v302 = vld [vmem:[%s166 + $0x2b8] sm:$0xff]
        %v303 = vld [vmem:[%s166 + $0x2c0] sm:$0xff]
        %v304 = vld [vmem:[%s166 + $0x2c8] sm:$0xff]
        %v305 = vld [vmem:[%s166 + $0x2d0] sm:$0xff]
        %v306 = vld [vmem:[%s166 + $0x2d8] sm:$0xff]
        %v307 = vld [vmem:[%s166 + $0x2e0] sm:$0xff]
        %v308 = vld [vmem:[%s166 + $0x2e8] sm:$0xff]
        %v309 = vld [vmem:[%s166 + $0x2f0] sm:$0xff]
        %v310 = vld [vmem:[%s166 + $0x2f8] sm:$0xff]
        %v311 = vld [vmem:[%s166 + $0x300] sm:$0xff]
        %v312 = vld [vmem:[%s166 + $0x308] sm:$0xff]
        %v313 = vld [vmem:[%s166 + $0x310] sm:$0xff]
        %v314 = vld [vmem:[%s166 + $0x318] sm:$0xff]
        %v315 = vld [vmem:[%s166 + $0x320] sm:$0xff]
        %v316 = vld [vmem:[%s166 + $0x328] sm:$0xff]
        %v317 = vld [vmem:[%s166 + $0x330] sm:$0xff]
        %v318 = vld [vmem:[%s166 + $0x338] sm:$0xff]
        %v319 = vld [vmem:[%s166 + $0x340] sm:$0xff]
        %v320 = vld [vmem:[%s166 + $0x348] sm:$0xff]
        %v321 = vld [vmem:[%s166 + $0x350] sm:$0xff]
        %v322 = vld [vmem:[%s166 + $0x358] sm:$0xff]
        %v323 = vld [vmem:[%s166 + $0x360] sm:$0xff]
        %v324 = vld [vmem:[%s166 + $0x368] sm:$0xff]
        %v325 = vld [vmem:[%s166 + $0x370] sm:$0xff]
        %v326 = vld [vmem:[%s166 + $0x378] sm:$0xff]
        %v327 = vld [vmem:[%s166 + $0x380] sm:$0xff]
        %v328 = vld [vmem:[%s166 + $0x388] sm:$0xff]
        %v329 = vld [vmem:[%s166 + $0x390] sm:$0xff]
        %v330 = vld [vmem:[%s166 + $0x398] sm:$0xff]
        %v331 = vld [vmem:[%s166 + $0x3a0] sm:$0xff]
        %v332 = vld [vmem:[%s166 + $0x3a8] sm:$0xff]
        %v333 = vld [vmem:[%s166 + $0x3b0] sm:$0xff]
        %v334 = vld [vmem:[%s166 + $0x3b8] sm:$0xff]
        %v335 = vld [vmem:[%s166 + $0x3c0] sm:$0xff]
        %v336 = vld [vmem:[%s166 + $0x3c8] sm:$0xff]
        %v337 = vld [vmem:[%s166 + $0x3d0] sm:$0xff]
        %v338 = vld [vmem:[%s166 + $0x3d8] sm:$0xff]
        %v339 = vld [vmem:[%s166 + $0x3e0] sm:$0xff]
        %v340 = vld [vmem:[%s166 + $0x3e8] sm:$0xff]
        %v341 = vld [vmem:[%s166 + $0x3f0] sm:$0xff]
        %v342 = vld [vmem:[%s166 + $0x3f8] sm:$0xff]
        %v343 = vld [vmem:[%s166 + $0x400] sm:$0xff]
        %v344 = vld [vmem:[%s166 + $0x408] sm:$0xff]
        %v345 = vld [vmem:[%s166 + $0x410] sm:$0xff]
        %v346 = vld [vmem:[%s166 + $0x418] sm:$0xff]
        %v347 = vld [vmem:[%s166 + $0x420] sm:$0xff]
        %v348 = vld [vmem:[%s166 + $0x428] sm:$0xff]
        %v349 = vld [vmem:[%s166 + $0x430] sm:$0xff]
        %v350 = vld [vmem:[%s166 + $0x438] sm:$0xff]
        %v351 = vld [vmem:[%s166 + $0x440] sm:$0xff]
        %v352 = vld [vmem:[%s166 + $0x448] sm:$0xff]
        %v353 = vld [vmem:[%s166 + $0x450] sm:$0xff]
        %v354 = vld [vmem:[%s166 + $0x458] sm:$0xff]
        %v355 = vld [vmem:[%s166 + $0x460] sm:$0xff]
        %v356 = vld [vmem:[%s166 + $0x468] sm:$0xff]
        %v357 = vld [vmem:[%s166 + $0x470] sm:$0xff]
        %v358 = vld [vmem:[%s166 + $0x478] sm:$0xff]
        %v359 = vld [vmem:[%s166 + $0x480] sm:$0xff]
        %v360 = vld [vmem:[%s166 + $0x488] sm:$0xff]
        %v361 = vld [vmem:[%s166 + $0x490] sm:$0xff]
        %v362 = vld [vmem:[%s166 + $0x498] sm:$0xff]
        %v363 = vld [vmem:[%s166 + $0x4a0] sm:$0xff]
        %v364 = vld [vmem:[%s166 + $0x4a8] sm:$0xff]
        %v365 = vld [vmem:[%s166 + $0x4b0] sm:$0xff]
        %v366 = vld [vmem:[%s166 + $0x4b8] sm:$0xff]
        %v367 = vld [vmem:[%s166 + $0x4c0] sm:$0xff]
        %v368 = vld [vmem:[%s166 + $0x4c8] sm:$0xff]
        %v369 = vld [vmem:[%s166 + $0x4d0] sm:$0xff]
        %v370 = vld [vmem:[%s166 + $0x4d8] sm:$0xff]
        %v371 = vld [vmem:[%s166 + $0x4e0] sm:$0xff]
        %v372 = vld [vmem:[%s166 + $0x4e8] sm:$0xff]
        %v373 = vld [vmem:[%s166 + $0x4f0] sm:$0xff]
        %v374 = vld [vmem:[%s166 + $0x4f8] sm:$0xff]
        %v375 = vld [vmem:[%s166 + $0x500] sm:$0xff]
        %v376 = vld [vmem:[%s166 + $0x508] sm:$0xff]
        %v377 = vld [vmem:[%s166 + $0x510] sm:$0xff]
        %v378 = vld [vmem:[%s166 + $0x518] sm:$0xff]
        %v379 = vld [vmem:[%s166 + $0x520] sm:$0xff]
        %v380 = vld [vmem:[%s166 + $0x528] sm:$0xff]
        %v381 = vld [vmem:[%s166 + $0x530] sm:$0xff]
        %v382 = vld [vmem:[%s166 + $0x538] sm:$0xff]
        %v383 = vld [vmem:[%s166 + $0x540] sm:$0xff]
        %v384 = vld [vmem:[%s166 + $0x548] sm:$0xff]
        %v385 = vld [vmem:[%s166 + $0x550] sm:$0xff]
        %v386 = vld [vmem:[%s166 + $0x558] sm:$0xff]
        %v387 = vld [vmem:[%s166 + $0x560] sm:$0xff]
        %v388 = vld [vmem:[%s166 + $0x568] sm:$0xff]
        %v389 = vld [vmem:[%s166 + $0x570] sm:$0xff]
        %v390 = vld [vmem:[%s166 + $0x578] sm:$0xff]
        %v391 = vld [vmem:[%s166 + $0x580] sm:$0xff]
        %v392 = vld [vmem:[%s166 + $0x588] sm:$0xff]
        %v393 = vld [vmem:[%s166 + $0x590] sm:$0xff]
        %v394 = vld [vmem:[%s166 + $0x598] sm:$0xff]
        %v395 = vld [vmem:[%s166 + $0x5a0] sm:$0xff]
        %v396 = vld [vmem:[%s166 + $0x5a8] sm:$0xff]
        %v397 = vld [vmem:[%s166 + $0x5b0] sm:$0xff]
        %v398 = vld [vmem:[%s166 + $0x5b8] sm:$0xff]
        %v399 = vld [vmem:[%s166 + $0x5c0] sm:$0xff]
        %v400 = vld [vmem:[%s166 + $0x5c8] sm:$0xff]
        %v401 = vld [vmem:[%s166 + $0x5d0] sm:$0xff]
        %v402 = vld [vmem:[%s166 + $0x5d8] sm:$0xff]
        %v403 = vld [vmem:[%s166 + $0x5e0] sm:$0xff]
        %v404 = vld [vmem:[%s166 + $0x5e8] sm:$0xff]
        %v405 = vld [vmem:[%s166 + $0x5f0] sm:$0xff]
        %v406 = vld [vmem:[%s166 + $0x5f8] sm:$0xff]
        %v407 = vld [vmem:[%s166 + $0x600] sm:$0xff]
        %v408 = vld [vmem:[%s166 + $0x608] sm:$0xff]
        %v409 = vld [vmem:[%s166 + $0x610] sm:$0xff]
        %v410 = vld [vmem:[%s166 + $0x618] sm:$0xff]
        %v411 = vld [vmem:[%s166 + $0x620] sm:$0xff]
        %v412 = vld [vmem:[%s166 + $0x628] sm:$0xff]
        %v413 = vld [vmem:[%s166 + $0x630] sm:$0xff]
        %v414 = vld [vmem:[%s166 + $0x638] sm:$0xff]
        %v415 = vld [vmem:[%s166 + $0x640] sm:$0xff]
        %v416 = vld [vmem:[%s166 + $0x648] sm:$0xff]
        %v417 = vld [vmem:[%s166 + $0x650] sm:$0xff]
        %v418 = vld [vmem:[%s166 + $0x658] sm:$0xff]
        %v419 = vld [vmem:[%s166 + $0x660] sm:$0xff]
        %v420 = vld [vmem:[%s166 + $0x668] sm:$0xff]
        %v421 = vld [vmem:[%s166 + $0x670] sm:$0xff]
        %v422 = vld [vmem:[%s166 + $0x678] sm:$0xff]
        %v423 = vld [vmem:[%s166 + $0x680] sm:$0xff]
        %v424 = vld [vmem:[%s166 + $0x688] sm:$0xff]
        %v425 = vld [vmem:[%s166 + $0x690] sm:$0xff]
        %v426 = vld [vmem:[%s166 + $0x698] sm:$0xff]
        %v427 = vld [vmem:[%s166 + $0x6a0] sm:$0xff]
        %v428 = vld [vmem:[%s166 + $0x6a8] sm:$0xff]
        %v429 = vld [vmem:[%s166 + $0x6b0] sm:$0xff]
        %v430 = vld [vmem:[%s166 + $0x6b8] sm:$0xff]
        %v431 = vld [vmem:[%s166 + $0x6c0] sm:$0xff]
        %v432 = vld [vmem:[%s166 + $0x6c8] sm:$0xff]
        %v433 = vld [vmem:[%s166 + $0x6d0] sm:$0xff]
        %v434 = vld [vmem:[%s166 + $0x6d8] sm:$0xff]
        %v435 = vld [vmem:[%s166 + $0x6e0] sm:$0xff]
        %v436 = vld [vmem:[%s166 + $0x6e8] sm:$0xff]
        %v437 = vld [vmem:[%s166 + $0x6f0] sm:$0xff]
        %v438 = vld [vmem:[%s166 + $0x6f8] sm:$0xff]
        %v439 = vld [vmem:[%s166 + $0x700] sm:$0xff]
        %v440 = vld [vmem:[%s166 + $0x708] sm:$0xff]
        %v441 = vld [vmem:[%s166 + $0x710] sm:$0xff]
        %v442 = vld [vmem:[%s166 + $0x718] sm:$0xff]
        %v443 = vld [vmem:[%s166 + $0x720] sm:$0xff]
        %v444 = vld [vmem:[%s166 + $0x728] sm:$0xff]
        %v445 = vld [vmem:[%s166 + $0x730] sm:$0xff]
        %v446 = vld [vmem:[%s166 + $0x738] sm:$0xff]
        %v447 = vld [vmem:[%s166 + $0x740] sm:$0xff]
        %v448 = vld [vmem:[%s166 + $0x748] sm:$0xff]
        %v449 = vld [vmem:[%s166 + $0x750] sm:$0xff]
        %v450 = vld [vmem:[%s166 + $0x758] sm:$0xff]
        %v451 = vld [vmem:[%s166 + $0x760] sm:$0xff]
        %v452 = vld [vmem:[%s166 + $0x768] sm:$0xff]
        %v453 = vld [vmem:[%s166 + $0x770] sm:$0xff]
        %v454 = vld [vmem:[%s166 + $0x778] sm:$0xff]
        %v455 = vld [vmem:[%s166 + $0x780] sm:$0xff]
        %v456 = vld [vmem:[%s166 + $0x788] sm:$0xff]
        %v457 = vld [vmem:[%s166 + $0x790] sm:$0xff]
        %v458 = vld [vmem:[%s166 + $0x798] sm:$0xff]
        %v459 = vld [vmem:[%s166 + $0x7a0] sm:$0xff]
        %v460 = vld [vmem:[%s166 + $0x7a8] sm:$0xff]
        %v461 = vld [vmem:[%s166 + $0x7b0] sm:$0xff]
        %v462 = vld [vmem:[%s166 + $0x7b8] sm:$0xff]
        %v463 = vld [vmem:[%s166 + $0x7c0] sm:$0xff]
        %v464 = vld [vmem:[%s166 + $0x7c8] sm:$0xff]
        %v465 = vld [vmem:[%s166 + $0x7d0] sm:$0xff]
        %v466 = vld [vmem:[%s166 + $0x7d8] sm:$0xff]
        %v467 = vld [vmem:[%s166 + $0x7e0] sm:$0xff]
        %v468 = vld [vmem:[%s166 + $0x7e8] sm:$0xff]
        %v469 = vld [vmem:[%s166 + $0x7f0] sm:$0xff]
        %v470 = vld [vmem:[%s166 + $0x7f8] sm:$0xff]
        %v471 = vld [vmem:[%s184] sm:$0xff]
        %v472 = vld [vmem:[%s184 + $0x8] sm:$0xff]
        %v473 = vld [vmem:[%s184 + $0x10] sm:$0xff]
        %v474 = vld [vmem:[%s184 + $0x18] sm:$0xff]
        %v475 = vld [vmem:[%s184 + $0x20] sm:$0xff]
        %v476 = vld [vmem:[%s184 + $0x28] sm:$0xff]
        %v477 = vld [vmem:[%s184 + $0x30] sm:$0xff]
        %v478 = vld [vmem:[%s184 + $0x38] sm:$0xff]
        %v479 = vadd.f32 %v215, %v223
        %v480 = vadd.f32 %v479, %v231
        %v481 = vadd.f32 %v480, %v239
        %v482 = vadd.f32 %v481, %v247
        %v483 = vadd.f32 %v482, %v255
        %v484 = vadd.f32 %v483, %v263
        %v485 = vadd.f32 %v484, %v271
        %v486 = vadd.f32 %v485, %v279
        %v487 = vadd.f32 %v486, %v287
        %v488 = vadd.f32 %v487, %v295
        %v489 = vadd.f32 %v488, %v303
        %v490 = vadd.f32 %v489, %v311
        %v491 = vadd.f32 %v490, %v319
        %v492 = vadd.f32 %v491, %v327
        %v493 = vadd.f32 %v492, %v335
        %v494 = vadd.f32 %v493, %v343
        %v495 = vadd.f32 %v494, %v351
        %v496 = vadd.f32 %v495, %v359
        %v497 = vadd.f32 %v496, %v367
        %v498 = vadd.f32 %v497, %v375
        %v499 = vadd.f32 %v498, %v383
        %v500 = vadd.f32 %v499, %v391
        %v501 = vadd.f32 %v500, %v399
        %v502 = vadd.f32 %v501, %v407
        %v503 = vadd.f32 %v502, %v415
        %v504 = vadd.f32 %v503, %v423
        %v505 = vadd.f32 %v504, %v431
        %v506 = vadd.f32 %v505, %v439
        %v507 = vadd.f32 %v506, %v447
        %v508 = vadd.f32 %v507, %v455
        %v509 = vadd.f32 %v508, %v463
        %v510 = vadd.f32 %v216, %v224
        %v511 = vadd.f32 %v510, %v232
        %v512 = vadd.f32 %v511, %v240
        %v513 = vadd.f32 %v512, %v248
        %v514 = vadd.f32 %v513, %v256
        %v515 = vadd.f32 %v514, %v264
        %v516 = vadd.f32 %v515, %v272
        %v517 = vadd.f32 %v516, %v280
        %v518 = vadd.f32 %v517, %v288
        %v519 = vadd.f32 %v518, %v296
        %v520 = vadd.f32 %v519, %v304
        %v521 = vadd.f32 %v520, %v312
        %v522 = vadd.f32 %v521, %v320
        %v523 = vadd.f32 %v522, %v328
        %v524 = vadd.f32 %v523, %v336
        %v525 = vadd.f32 %v524, %v344
        %v526 = vadd.f32 %v525, %v352
        %v527 = vadd.f32 %v526, %v360
        %v528 = vadd.f32 %v527, %v368
        %v529 = vadd.f32 %v528, %v376
        %v530 = vadd.f32 %v529, %v384
        %v531 = vadd.f32 %v530, %v392
        %v532 = vadd.f32 %v531, %v400
        %v533 = vadd.f32 %v532, %v408
        %v534 = vadd.f32 %v533, %v416
        %v535 = vadd.f32 %v534, %v424
        %v536 = vadd.f32 %v535, %v432
        %v537 = vadd.f32 %v536, %v440
        %v538 = vadd.f32 %v537, %v448
        %v539 = vadd.f32 %v538, %v456
        %v540 = vadd.f32 %v539, %v464
        %v541 = vadd.f32 %v217, %v225
        %v542 = vadd.f32 %v541, %v233
        %v543 = vadd.f32 %v542, %v241
        %v544 = vadd.f32 %v543, %v249
        %v545 = vadd.f32 %v544, %v257
        %v546 = vadd.f32 %v545, %v265
        %v547 = vadd.f32 %v546, %v273
        %v548 = vadd.f32 %v547, %v281
        %v549 = vadd.f32 %v548, %v289
        %v550 = vadd.f32 %v549, %v297
        %v551 = vadd.f32 %v550, %v305
        %v552 = vadd.f32 %v551, %v313
        %v553 = vadd.f32 %v552, %v321
        %v554 = vadd.f32 %v553, %v329
        %v555 = vadd.f32 %v554, %v337
        %v556 = vadd.f32 %v555, %v345
        %v557 = vadd.f32 %v556, %v353
        %v558 = vadd.f32 %v557, %v361
        %v559 = vadd.f32 %v558, %v369
        %v560 = vadd.f32 %v559, %v377
        %v561 = vadd.f32 %v560, %v385
        %v562 = vadd.f32 %v561, %v393
        %v563 = vadd.f32 %v562, %v401
        %v564 = vadd.f32 %v563, %v409
        %v565 = vadd.f32 %v564, %v417
        %v566 = vadd.f32 %v565, %v425
        %v567 = vadd.f32 %v566, %v433
        %v568 = vadd.f32 %v567, %v441
        %v569 = vadd.f32 %v568, %v449
        %v570 = vadd.f32 %v569, %v457
        %v571 = vadd.f32 %v570, %v465
        %v572 = vadd.f32 %v218, %v226
        %v573 = vadd.f32 %v572, %v234
        %v574 = vadd.f32 %v573, %v242
        %v575 = vadd.f32 %v574, %v250
        %v576 = vadd.f32 %v575, %v258
        %v577 = vadd.f32 %v576, %v266
        %v578 = vadd.f32 %v577, %v274
        %v579 = vadd.f32 %v578, %v282
        %v580 = vadd.f32 %v579, %v290
        %v581 = vadd.f32 %v580, %v298
        %v582 = vadd.f32 %v581, %v306
        %v583 = vadd.f32 %v582, %v314
        %v584 = vadd.f32 %v583, %v322
        %v585 = vadd.f32 %v584, %v330
        %v586 = vadd.f32 %v585, %v338
        %v587 = vadd.f32 %v586, %v346
        %v588 = vadd.f32 %v587, %v354
        %v589 = vadd.f32 %v588, %v362
        %v590 = vadd.f32 %v589, %v370
        %v591 = vadd.f32 %v590, %v378
        %v592 = vadd.f32 %v591, %v386
        %v593 = vadd.f32 %v592, %v394
        %v594 = vadd.f32 %v593, %v402
        %v595 = vadd.f32 %v594, %v410
        %v596 = vadd.f32 %v595, %v418
        %v597 = vadd.f32 %v596, %v426
        %v598 = vadd.f32 %v597, %v434
        %v599 = vadd.f32 %v598, %v442
        %v600 = vadd.f32 %v599, %v450
        %v601 = vadd.f32 %v600, %v458
        %v602 = vadd.f32 %v601, %v466
        %v603 = vadd.f32 %v219, %v227
        %v604 = vadd.f32 %v603, %v235
        %v605 = vadd.f32 %v604, %v243
        %v606 = vadd.f32 %v605, %v251
        %v607 = vadd.f32 %v606, %v259
        %v608 = vadd.f32 %v607, %v267
        %v609 = vadd.f32 %v608, %v275
        %v610 = vadd.f32 %v609, %v283
        %v611 = vadd.f32 %v610, %v291
        %v612 = vadd.f32 %v611, %v299
        %v613 = vadd.f32 %v612, %v307
        %v614 = vadd.f32 %v613, %v315
        %v615 = vadd.f32 %v614, %v323
        %v616 = vadd.f32 %v615, %v331
        %v617 = vadd.f32 %v616, %v339
        %v618 = vadd.f32 %v617, %v347
        %v619 = vadd.f32 %v618, %v355
        %v620 = vadd.f32 %v619, %v363
        %v621 = vadd.f32 %v620, %v371
        %v622 = vadd.f32 %v621, %v379
        %v623 = vadd.f32 %v622, %v387
        %v624 = vadd.f32 %v623, %v395
        %v625 = vadd.f32 %v624, %v403
        %v626 = vadd.f32 %v625, %v411
        %v627 = vadd.f32 %v626, %v419
        %v628 = vadd.f32 %v627, %v427
        %v629 = vadd.f32 %v628, %v435
        %v630 = vadd.f32 %v629, %v443
        %v631 = vadd.f32 %v630, %v451
        %v632 = vadd.f32 %v631, %v459
        %v633 = vadd.f32 %v632, %v467
        %v634 = vadd.f32 %v220, %v228
        %v635 = vadd.f32 %v634, %v236
        %v636 = vadd.f32 %v635, %v244
        %v637 = vadd.f32 %v636, %v252
        %v638 = vadd.f32 %v637, %v260
        %v639 = vadd.f32 %v638, %v268
        %v640 = vadd.f32 %v639, %v276
        %v641 = vadd.f32 %v640, %v284
        %v642 = vadd.f32 %v641, %v292
        %v643 = vadd.f32 %v642, %v300
        %v644 = vadd.f32 %v643, %v308
        %v645 = vadd.f32 %v644, %v316
        %v646 = vadd.f32 %v645, %v324
        %v647 = vadd.f32 %v646, %v332
        %v648 = vadd.f32 %v647, %v340
        %v649 = vadd.f32 %v648, %v348
        %v650 = vadd.f32 %v649, %v356
        %v651 = vadd.f32 %v650, %v364
        %v652 = vadd.f32 %v651, %v372
        %v653 = vadd.f32 %v652, %v380
        %v654 = vadd.f32 %v653, %v388
        %v655 = vadd.f32 %v654, %v396
        %v656 = vadd.f32 %v655, %v404
        %v657 = vadd.f32 %v656, %v412
        %v658 = vadd.f32 %v657, %v420
        %v659 = vadd.f32 %v658, %v428
        %v660 = vadd.f32 %v659, %v436
        %v661 = vadd.f32 %v660, %v444
        %v662 = vadd.f32 %v661, %v452
        %v663 = vadd.f32 %v662, %v460
        %v664 = vadd.f32 %v663, %v468
        %v665 = vadd.f32 %v221, %v229
        %v666 = vadd.f32 %v665, %v237
        %v667 = vadd.f32 %v666, %v245
        %v668 = vadd.f32 %v667, %v253
        %v669 = vadd.f32 %v668, %v261
        %v670 = vadd.f32 %v669, %v269
        %v671 = vadd.f32 %v670, %v277
        %v672 = vadd.f32 %v671, %v285
        %v673 = vadd.f32 %v672, %v293
        %v674 = vadd.f32 %v673, %v301
        %v675 = vadd.f32 %v674, %v309
        %v676 = vadd.f32 %v675, %v317
        %v677 = vadd.f32 %v676, %v325
        %v678 = vadd.f32 %v677, %v333
        %v679 = vadd.f32 %v678, %v341
        %v680 = vadd.f32 %v679, %v349
        %v681 = vadd.f32 %v680, %v357
        %v682 = vadd.f32 %v681, %v365
        %v683 = vadd.f32 %v682, %v373
        %v684 = vadd.f32 %v683, %v381
        %v685 = vadd.f32 %v684, %v389
        %v686 = vadd.f32 %v685, %v397
        %v687 = vadd.f32 %v686, %v405
        %v688 = vadd.f32 %v687, %v413
        %v689 = vadd.f32 %v688, %v421
        %v690 = vadd.f32 %v689, %v429
        %v691 = vadd.f32 %v690, %v437
        %v692 = vadd.f32 %v691, %v445
        %v693 = vadd.f32 %v692, %v453
        %v694 = vadd.f32 %v693, %v461
        %v695 = vadd.f32 %v694, %v469
        %v696 = vadd.f32 %v222, %v230
        %v697 = vadd.f32 %v696, %v238
        %v698 = vadd.f32 %v697, %v246
        %v699 = vadd.f32 %v698, %v254
        %v700 = vadd.f32 %v699, %v262
        %v701 = vadd.f32 %v700, %v270
        %v702 = vadd.f32 %v701, %v278
        %v703 = vadd.f32 %v702, %v286
        %v704 = vadd.f32 %v703, %v294
        %v705 = vadd.f32 %v704, %v302
        %v706 = vadd.f32 %v705, %v310
        %v707 = vadd.f32 %v706, %v318
        %v708 = vadd.f32 %v707, %v326
        %v709 = vadd.f32 %v708, %v334
        %v710 = vadd.f32 %v709, %v342
        %v711 = vadd.f32 %v710, %v350
        %v712 = vadd.f32 %v711, %v358
        %v713 = vadd.f32 %v712, %v366
        %v714 = vadd.f32 %v713, %v374
        %v715 = vadd.f32 %v714, %v382
        %v716 = vadd.f32 %v715, %v390
        %v717 = vadd.f32 %v716, %v398
        %v718 = vadd.f32 %v717, %v406
        %v719 = vadd.f32 %v718, %v414
        %v720 = vadd.f32 %v719, %v422
        %v721 = vadd.f32 %v720, %v430
        %v722 = vadd.f32 %v721, %v438
        %v723 = vadd.f32 %v722, %v446
        %v724 = vadd.f32 %v723, %v454
        %v725 = vadd.f32 %v724, %v462
        %v726 = vadd.f32 %v725, %v470
        %v727 = vadd.f32 %v471, %v509
        %v728 = vadd.f32 %v472, %v540
        %v729 = vadd.f32 %v473, %v571
        %v730 = vadd.f32 %v474, %v602
        %v731 = vadd.f32 %v475, %v633
        %v732 = vadd.f32 %v476, %v664
        %v733 = vadd.f32 %v477, %v695
        %v734 = vadd.f32 %v478, %v726
        %735 = vst [vmem:[%s184] sm:$0xff] %v727
        %736 = vst [vmem:[%s184 + $0x8] sm:$0xff] %v728
        %737 = vst [vmem:[%s184 + $0x10] sm:$0xff] %v729
        %738 = vst [vmem:[%s184 + $0x18] sm:$0xff] %v730
        %739 = vst [vmem:[%s184 + $0x20] sm:$0xff] %v731
        %740 = vst [vmem:[%s184 + $0x28] sm:$0xff] %v732
        %741 = vst [vmem:[%s184 + $0x30] sm:$0xff] %v733
        %742 = vst [vmem:[%s184 + $0x38] sm:$0xff] %v734
        %v743 = vld [vmem:[%s191] sm:$0xff]
        %v744 = vld [vmem:[%s191 + $0x8] sm:$0xff]
        %v745 = vld [vmem:[%s191 + $0x10] sm:$0xff]
        %v746 = vld [vmem:[%s191 + $0x18] sm:$0xff]
        %v747 = vld [vmem:[%s191 + $0x20] sm:$0xff]
        %v748 = vld [vmem:[%s191 + $0x28] sm:$0xff]
        %v749 = vld [vmem:[%s191 + $0x30] sm:$0xff]
        %v750 = vld [vmem:[%s191 + $0x38] sm:$0xff]
        %v751 = vmul.f32 %v215, %v215
        %v752 = vmul.f32 %v216, %v216
        %v753 = vmul.f32 %v217, %v217
        %v754 = vmul.f32 %v218, %v218
        %v755 = vmul.f32 %v219, %v219
        %v756 = vmul.f32 %v220, %v220
        %v757 = vmul.f32 %v221, %v221
        %v758 = vmul.f32 %v222, %v222
        %v759 = vmul.f32 %v223, %v223
        %v760 = vmul.f32 %v224, %v224
        %v761 = vmul.f32 %v225, %v225
        %v762 = vmul.f32 %v226, %v226
        %v763 = vmul.f32 %v227, %v227
        %v764 = vmul.f32 %v228, %v228
        %v765 = vmul.f32 %v229, %v229
        %v766 = vmul.f32 %v230, %v230
        %v767 = vmul.f32 %v231, %v231
        %v768 = vmul.f32 %v232, %v232
        %v769 = vmul.f32 %v233, %v233
        %v770 = vmul.f32 %v234, %v234
        %v771 = vmul.f32 %v235, %v235
        %v772 = vmul.f32 %v236, %v236
        %v773 = vmul.f32 %v237, %v237
        %v774 = vmul.f32 %v238, %v238
        %v775 = vmul.f32 %v239, %v239
        %v776 = vmul.f32 %v240, %v240
        %v777 = vmul.f32 %v241, %v241
        %v778 = vmul.f32 %v242, %v242
        %v779 = vmul.f32 %v243, %v243
        %v780 = vmul.f32 %v244, %v244
        %v781 = vmul.f32 %v245, %v245
        %v782 = vmul.f32 %v246, %v246
        %v783 = vmul.f32 %v247, %v247
        %v784 = vmul.f32 %v248, %v248
        %v785 = vmul.f32 %v249, %v249
        %v786 = vmul.f32 %v250, %v250
        %v787 = vmul.f32 %v251, %v251
        %v788 = vmul.f32 %v252, %v252
        %v789 = vmul.f32 %v253, %v253
        %v790 = vmul.f32 %v254, %v254
        %v791 = vmul.f32 %v255, %v255
        %v792 = vmul.f32 %v256, %v256
        %v793 = vmul.f32 %v257, %v257
        %v794 = vmul.f32 %v258, %v258
        %v795 = vmul.f32 %v259, %v259
        %v796 = vmul.f32 %v260, %v260
        %v797 = vmul.f32 %v261, %v261
        %v798 = vmul.f32 %v262, %v262
        %v799 = vmul.f32 %v263, %v263
        %v800 = vmul.f32 %v264, %v264
        %v801 = vmul.f32 %v265, %v265
        %v802 = vmul.f32 %v266, %v266
        %v803 = vmul.f32 %v267, %v267
        %v804 = vmul.f32 %v268, %v268
        %v805 = vmul.f32 %v269, %v269
        %v806 = vmul.f32 %v270, %v270
        %v807 = vmul.f32 %v271, %v271
        %v808 = vmul.f32 %v272, %v272
        %v809 = vmul.f32 %v273, %v273
        %v810 = vmul.f32 %v274, %v274
        %v811 = vmul.f32 %v275, %v275
        %v812 = vmul.f32 %v276, %v276
        %v813 = vmul.f32 %v277, %v277
        %v814 = vmul.f32 %v278, %v278
        %v815 = vmul.f32 %v279, %v279
        %v816 = vmul.f32 %v280, %v280
        %v817 = vmul.f32 %v281, %v281
        %v818 = vmul.f32 %v282, %v282
        %v819 = vmul.f32 %v283, %v283
        %v820 = vmul.f32 %v284, %v284
        %v821 = vmul.f32 %v285, %v285
        %v822 = vmul.f32 %v286, %v286
        %v823 = vmul.f32 %v287, %v287
        %v824 = vmul.f32 %v288, %v288
        %v825 = vmul.f32 %v289, %v289
        %v826 = vmul.f32 %v290, %v290
        %v827 = vmul.f32 %v291, %v291
        %v828 = vmul.f32 %v292, %v292
        %v829 = vmul.f32 %v293, %v293
        %v830 = vmul.f32 %v294, %v294
        %v831 = vmul.f32 %v295, %v295
        %v832 = vmul.f32 %v296, %v296
        %v833 = vmul.f32 %v297, %v297
        %v834 = vmul.f32 %v298, %v298
        %v835 = vmul.f32 %v299, %v299
        %v836 = vmul.f32 %v300, %v300
        %v837 = vmul.f32 %v301, %v301
        %v838 = vmul.f32 %v302, %v302
        %v839 = vmul.f32 %v303, %v303
        %v840 = vmul.f32 %v304, %v304
        %v841 = vmul.f32 %v305, %v305
        %v842 = vmul.f32 %v306, %v306
        %v843 = vmul.f32 %v307, %v307
        %v844 = vmul.f32 %v308, %v308
        %v845 = vmul.f32 %v309, %v309
        %v846 = vmul.f32 %v310, %v310
        %v847 = vmul.f32 %v311, %v311
        %v848 = vmul.f32 %v312, %v312
        %v849 = vmul.f32 %v313, %v313
        %v850 = vmul.f32 %v314, %v314
        %v851 = vmul.f32 %v315, %v315
        %v852 = vmul.f32 %v316, %v316
        %v853 = vmul.f32 %v317, %v317
        %v854 = vmul.f32 %v318, %v318
        %v855 = vmul.f32 %v319, %v319
        %v856 = vmul.f32 %v320, %v320
        %v857 = vmul.f32 %v321, %v321
        %v858 = vmul.f32 %v322, %v322
        %v859 = vmul.f32 %v323, %v323
        %v860 = vmul.f32 %v324, %v324
        %v861 = vmul.f32 %v325, %v325
        %v862 = vmul.f32 %v326, %v326
        %v863 = vmul.f32 %v327, %v327
        %v864 = vmul.f32 %v328, %v328
        %v865 = vmul.f32 %v329, %v329
        %v866 = vmul.f32 %v330, %v330
        %v867 = vmul.f32 %v331, %v331
        %v868 = vmul.f32 %v332, %v332
        %v869 = vmul.f32 %v333, %v333
        %v870 = vmul.f32 %v334, %v334
        %v871 = vmul.f32 %v335, %v335
        %v872 = vmul.f32 %v336, %v336
        %v873 = vmul.f32 %v337, %v337
        %v874 = vmul.f32 %v338, %v338
        %v875 = vmul.f32 %v339, %v339
        %v876 = vmul.f32 %v340, %v340
        %v877 = vmul.f32 %v341, %v341
        %v878 = vmul.f32 %v342, %v342
        %v879 = vmul.f32 %v343, %v343
        %v880 = vmul.f32 %v344, %v344
        %v881 = vmul.f32 %v345, %v345
        %v882 = vmul.f32 %v346, %v346
        %v883 = vmul.f32 %v347, %v347
        %v884 = vmul.f32 %v348, %v348
        %v885 = vmul.f32 %v349, %v349
        %v886 = vmul.f32 %v350, %v350
        %v887 = vmul.f32 %v351, %v351
        %v888 = vmul.f32 %v352, %v352
        %v889 = vmul.f32 %v353, %v353
        %v890 = vmul.f32 %v354, %v354
        %v891 = vmul.f32 %v355, %v355
        %v892 = vmul.f32 %v356, %v356
        %v893 = vmul.f32 %v357, %v357
        %v894 = vmul.f32 %v358, %v358
        %v895 = vmul.f32 %v359, %v359
        %v896 = vmul.f32 %v360, %v360
        %v897 = vmul.f32 %v361, %v361
        %v898 = vmul.f32 %v362, %v362
        %v899 = vmul.f32 %v363, %v363
        %v900 = vmul.f32 %v364, %v364
        %v901 = vmul.f32 %v365, %v365
        %v902 = vmul.f32 %v366, %v366
        %v903 = vmul.f32 %v367, %v367
        %v904 = vmul.f32 %v368, %v368
        %v905 = vmul.f32 %v369, %v369
        %v906 = vmul.f32 %v370, %v370
        %v907 = vmul.f32 %v371, %v371
        %v908 = vmul.f32 %v372, %v372
        %v909 = vmul.f32 %v373, %v373
        %v910 = vmul.f32 %v374, %v374
        %v911 = vmul.f32 %v375, %v375
        %v912 = vmul.f32 %v376, %v376
        %v913 = vmul.f32 %v377, %v377
        %v914 = vmul.f32 %v378, %v378
        %v915 = vmul.f32 %v379, %v379
        %v916 = vmul.f32 %v380, %v380
        %v917 = vmul.f32 %v381, %v381
        %v918 = vmul.f32 %v382, %v382
        %v919 = vmul.f32 %v383, %v383
        %v920 = vmul.f32 %v384, %v384
        %v921 = vmul.f32 %v385, %v385
        %v922 = vmul.f32 %v386, %v386
        %v923 = vmul.f32 %v387, %v387
        %v924 = vmul.f32 %v388, %v388
        %v925 = vmul.f32 %v389, %v389
        %v926 = vmul.f32 %v390, %v390
        %v927 = vmul.f32 %v391, %v391
        %v928 = vmul.f32 %v392, %v392
        %v929 = vmul.f32 %v393, %v393
        %v930 = vmul.f32 %v394, %v394
        %v931 = vmul.f32 %v395, %v395
        %v932 = vmul.f32 %v396, %v396
        %v933 = vmul.f32 %v397, %v397
        %v934 = vmul.f32 %v398, %v398
        %v935 = vmul.f32 %v399, %v399
        %v936 = vmul.f32 %v400, %v400
        %v937 = vmul.f32 %v401, %v401
        %v938 = vmul.f32 %v402, %v402
        %v939 = vmul.f32 %v403, %v403
        %v940 = vmul.f32 %v404, %v404
        %v941 = vmul.f32 %v405, %v405
        %v942 = vmul.f32 %v406, %v406
        %v943 = vmul.f32 %v407, %v407
        %v944 = vmul.f32 %v408, %v408
        %v945 = vmul.f32 %v409, %v409
        %v946 = vmul.f32 %v410, %v410
        %v947 = vmul.f32 %v411, %v411
        %v948 = vmul.f32 %v412, %v412
        %v949 = vmul.f32 %v413, %v413
        %v950 = vmul.f32 %v414, %v414
        %v951 = vmul.f32 %v415, %v415
        %v952 = vmul.f32 %v416, %v416
        %v953 = vmul.f32 %v417, %v417
        %v954 = vmul.f32 %v418, %v418
        %v955 = vmul.f32 %v419, %v419
        %v956 = vmul.f32 %v420, %v420
        %v957 = vmul.f32 %v421, %v421
        %v958 = vmul.f32 %v422, %v422
        %v959 = vmul.f32 %v423, %v423
        %v960 = vmul.f32 %v424, %v424
        %v961 = vmul.f32 %v425, %v425
        %v962 = vmul.f32 %v426, %v426
        %v963 = vmul.f32 %v427, %v427
        %v964 = vmul.f32 %v428, %v428
        %v965 = vmul.f32 %v429, %v429
        %v966 = vmul.f32 %v430, %v430
        %v967 = vmul.f32 %v431, %v431
        %v968 = vmul.f32 %v432, %v432
        %v969 = vmul.f32 %v433, %v433
        %v970 = vmul.f32 %v434, %v434
        %v971 = vmul.f32 %v435, %v435
        %v972 = vmul.f32 %v436, %v436
        %v973 = vmul.f32 %v437, %v437
        %v974 = vmul.f32 %v438, %v438
        %v975 = vmul.f32 %v439, %v439
        %v976 = vmul.f32 %v440, %v440
        %v977 = vmul.f32 %v441, %v441
        %v978 = vmul.f32 %v442, %v442
        %v979 = vmul.f32 %v443, %v443
        %v980 = vmul.f32 %v444, %v444
        %v981 = vmul.f32 %v445, %v445
        %v982 = vmul.f32 %v446, %v446
        %v983 = vmul.f32 %v447, %v447
        %v984 = vmul.f32 %v448, %v448
        %v985 = vmul.f32 %v449, %v449
        %v986 = vmul.f32 %v450, %v450
        %v987 = vmul.f32 %v451, %v451
        %v988 = vmul.f32 %v452, %v452
        %v989 = vmul.f32 %v453, %v453
        %v990 = vmul.f32 %v454, %v454
        %v991 = vmul.f32 %v455, %v455
        %v992 = vmul.f32 %v456, %v456
        %v993 = vmul.f32 %v457, %v457
        %v994 = vmul.f32 %v458, %v458
        %v995 = vmul.f32 %v459, %v459
        %v996 = vmul.f32 %v460, %v460
        %v997 = vmul.f32 %v461, %v461
        %v998 = vmul.f32 %v462, %v462
        %v999 = vmul.f32 %v463, %v463
        %v1000 = vmul.f32 %v464, %v464
        %v1001 = vmul.f32 %v465, %v465
        %v1002 = vmul.f32 %v466, %v466
        %v1003 = vmul.f32 %v467, %v467
        %v1004 = vmul.f32 %v468, %v468
        %v1005 = vmul.f32 %v469, %v469
        %v1006 = vmul.f32 %v470, %v470
        %v1007 = vadd.f32 %v751, %v759
        %v1008 = vadd.f32 %v1007, %v767
        %v1009 = vadd.f32 %v1008, %v775
        %v1010 = vadd.f32 %v1009, %v783
        %v1011 = vadd.f32 %v1010, %v791
        %v1012 = vadd.f32 %v1011, %v799
        %v1013 = vadd.f32 %v1012, %v807
        %v1014 = vadd.f32 %v1013, %v815
        %v1015 = vadd.f32 %v1014, %v823
        %v1016 = vadd.f32 %v1015, %v831
        %v1017 = vadd.f32 %v1016, %v839
        %v1018 = vadd.f32 %v1017, %v847
        %v1019 = vadd.f32 %v1018, %v855
        %v1020 = vadd.f32 %v1019, %v863
        %v1021 = vadd.f32 %v1020, %v871
        %v1022 = vadd.f32 %v1021, %v879
        %v1023 = vadd.f32 %v1022, %v887
        %v1024 = vadd.f32 %v1023, %v895
        %v1025 = vadd.f32 %v1024, %v903
        %v1026 = vadd.f32 %v1025, %v911
        %v1027 = vadd.f32 %v1026, %v919
        %v1028 = vadd.f32 %v1027, %v927
        %v1029 = vadd.f32 %v1028, %v935
        %v1030 = vadd.f32 %v1029, %v943
        %v1031 = vadd.f32 %v1030, %v951
        %v1032 = vadd.f32 %v1031, %v959
        %v1033 = vadd.f32 %v1032, %v967
        %v1034 = vadd.f32 %v1033, %v975
        %v1035 = vadd.f32 %v1034, %v983
        %v1036 = vadd.f32 %v1035, %v991
        %v1037 = vadd.f32 %v1036, %v999
        %v1038 = vadd.f32 %v752, %v760
        %v1039 = vadd.f32 %v1038, %v768
        %v1040 = vadd.f32 %v1039, %v776
        %v1041 = vadd.f32 %v1040, %v784
        %v1042 = vadd.f32 %v1041, %v792
        %v1043 = vadd.f32 %v1042, %v800
        %v1044 = vadd.f32 %v1043, %v808
        %v1045 = vadd.f32 %v1044, %v816
        %v1046 = vadd.f32 %v1045, %v824
        %v1047 = vadd.f32 %v1046, %v832
        %v1048 = vadd.f32 %v1047, %v840
        %v1049 = vadd.f32 %v1048, %v848
        %v1050 = vadd.f32 %v1049, %v856
        %v1051 = vadd.f32 %v1050, %v864
        %v1052 = vadd.f32 %v1051, %v872
        %v1053 = vadd.f32 %v1052, %v880
        %v1054 = vadd.f32 %v1053, %v888
        %v1055 = vadd.f32 %v1054, %v896
        %v1056 = vadd.f32 %v1055, %v904
        %v1057 = vadd.f32 %v1056, %v912
        %v1058 = vadd.f32 %v1057, %v920
        %v1059 = vadd.f32 %v1058, %v928
        %v1060 = vadd.f32 %v1059, %v936
        %v1061 = vadd.f32 %v1060, %v944
        %v1062 = vadd.f32 %v1061, %v952
        %v1063 = vadd.f32 %v1062, %v960
        %v1064 = vadd.f32 %v1063, %v968
        %v1065 = vadd.f32 %v1064, %v976
        %v1066 = vadd.f32 %v1065, %v984
        %v1067 = vadd.f32 %v1066, %v992
        %v1068 = vadd.f32 %v1067, %v1000
        %v1069 = vadd.f32 %v753, %v761
        %v1070 = vadd.f32 %v1069, %v769
        %v1071 = vadd.f32 %v1070, %v777
        %v1072 = vadd.f32 %v1071, %v785
        %v1073 = vadd.f32 %v1072, %v793
        %v1074 = vadd.f32 %v1073, %v801
        %v1075 = vadd.f32 %v1074, %v809
        %v1076 = vadd.f32 %v1075, %v817
        %v1077 = vadd.f32 %v1076, %v825
        %v1078 = vadd.f32 %v1077, %v833
        %v1079 = vadd.f32 %v1078, %v841
        %v1080 = vadd.f32 %v1079, %v849
        %v1081 = vadd.f32 %v1080, %v857
        %v1082 = vadd.f32 %v1081, %v865
        %v1083 = vadd.f32 %v1082, %v873
        %v1084 = vadd.f32 %v1083, %v881
        %v1085 = vadd.f32 %v1084, %v889
        %v1086 = vadd.f32 %v1085, %v897
        %v1087 = vadd.f32 %v1086, %v905
        %v1088 = vadd.f32 %v1087, %v913
        %v1089 = vadd.f32 %v1088, %v921
        %v1090 = vadd.f32 %v1089, %v929
        %v1091 = vadd.f32 %v1090, %v937
        %v1092 = vadd.f32 %v1091, %v945
        %v1093 = vadd.f32 %v1092, %v953
        %v1094 = vadd.f32 %v1093, %v961
        %v1095 = vadd.f32 %v1094, %v969
        %v1096 = vadd.f32 %v1095, %v977
        %v1097 = vadd.f32 %v1096, %v985
        %v1098 = vadd.f32 %v1097, %v993
        %v1099 = vadd.f32 %v1098, %v1001
        %v1100 = vadd.f32 %v754, %v762
        %v1101 = vadd.f32 %v1100, %v770
        %v1102 = vadd.f32 %v1101, %v778
        %v1103 = vadd.f32 %v1102, %v786
        %v1104 = vadd.f32 %v1103, %v794
        %v1105 = vadd.f32 %v1104, %v802
        %v1106 = vadd.f32 %v1105, %v810
        %v1107 = vadd.f32 %v1106, %v818
        %v1108 = vadd.f32 %v1107, %v826
        %v1109 = vadd.f32 %v1108, %v834
        %v1110 = vadd.f32 %v1109, %v842
        %v1111 = vadd.f32 %v1110, %v850
        %v1112 = vadd.f32 %v1111, %v858
        %v1113 = vadd.f32 %v1112, %v866
        %v1114 = vadd.f32 %v1113, %v874
        %v1115 = vadd.f32 %v1114, %v882
        %v1116 = vadd.f32 %v1115, %v890
        %v1117 = vadd.f32 %v1116, %v898
        %v1118 = vadd.f32 %v1117, %v906
        %v1119 = vadd.f32 %v1118, %v914
        %v1120 = vadd.f32 %v1119, %v922
        %v1121 = vadd.f32 %v1120, %v930
        %v1122 = vadd.f32 %v1121, %v938
        %v1123 = vadd.f32 %v1122, %v946
        %v1124 = vadd.f32 %v1123, %v954
        %v1125 = vadd.f32 %v1124, %v962
        %v1126 = vadd.f32 %v1125, %v970
        %v1127 = vadd.f32 %v1126, %v978
        %v1128 = vadd.f32 %v1127, %v986
        %v1129 = vadd.f32 %v1128, %v994
        %v1130 = vadd.f32 %v1129, %v1002
        %v1131 = vadd.f32 %v755, %v763
        %v1132 = vadd.f32 %v1131, %v771
        %v1133 = vadd.f32 %v1132, %v779
        %v1134 = vadd.f32 %v1133, %v787
        %v1135 = vadd.f32 %v1134, %v795
        %v1136 = vadd.f32 %v1135, %v803
        %v1137 = vadd.f32 %v1136, %v811
        %v1138 = vadd.f32 %v1137, %v819
        %v1139 = vadd.f32 %v1138, %v827
        %v1140 = vadd.f32 %v1139, %v835
        %v1141 = vadd.f32 %v1140, %v843
        %v1142 = vadd.f32 %v1141, %v851
        %v1143 = vadd.f32 %v1142, %v859
        %v1144 = vadd.f32 %v1143, %v867
        %v1145 = vadd.f32 %v1144, %v875
        %v1146 = vadd.f32 %v1145, %v883
        %v1147 = vadd.f32 %v1146, %v891
        %v1148 = vadd.f32 %v1147, %v899
        %v1149 = vadd.f32 %v1148, %v907
        %v1150 = vadd.f32 %v1149, %v915
        %v1151 = vadd.f32 %v1150, %v923
        %v1152 = vadd.f32 %v1151, %v931
        %v1153 = vadd.f32 %v1152, %v939
        %v1154 = vadd.f32 %v1153, %v947
        %v1155 = vadd.f32 %v1154, %v955
        %v1156 = vadd.f32 %v1155, %v963
        %v1157 = vadd.f32 %v1156, %v971
        %v1158 = vadd.f32 %v1157, %v979
        %v1159 = vadd.f32 %v1158, %v987
        %v1160 = vadd.f32 %v1159, %v995
        %v1161 = vadd.f32 %v1160, %v1003
        %v1162 = vadd.f32 %v756, %v764
        %v1163 = vadd.f32 %v1162, %v772
        %v1164 = vadd.f32 %v1163, %v780
        %v1165 = vadd.f32 %v1164, %v788
        %v1166 = vadd.f32 %v1165, %v796
        %v1167 = vadd.f32 %v1166, %v804
        %v1168 = vadd.f32 %v1167, %v812
        %v1169 = vadd.f32 %v1168, %v820
        %v1170 = vadd.f32 %v1169, %v828
        %v1171 = vadd.f32 %v1170, %v836
        %v1172 = vadd.f32 %v1171, %v844
        %v1173 = vadd.f32 %v1172, %v852
        %v1174 = vadd.f32 %v1173, %v860
        %v1175 = vadd.f32 %v1174, %v868
        %v1176 = vadd.f32 %v1175, %v876
        %v1177 = vadd.f32 %v1176, %v884
        %v1178 = vadd.f32 %v1177, %v892
        %v1179 = vadd.f32 %v1178, %v900
        %v1180 = vadd.f32 %v1179, %v908
        %v1181 = vadd.f32 %v1180, %v916
        %v1182 = vadd.f32 %v1181, %v924
        %v1183 = vadd.f32 %v1182, %v932
        %v1184 = vadd.f32 %v1183, %v940
        %v1185 = vadd.f32 %v1184, %v948
        %v1186 = vadd.f32 %v1185, %v956
        %v1187 = vadd.f32 %v1186, %v964
        %v1188 = vadd.f32 %v1187, %v972
        %v1189 = vadd.f32 %v1188, %v980
        %v1190 = vadd.f32 %v1189, %v988
        %v1191 = vadd.f32 %v1190, %v996
        %v1192 = vadd.f32 %v1191, %v1004
        %v1193 = vadd.f32 %v757, %v765
        %v1194 = vadd.f32 %v1193, %v773
        %v1195 = vadd.f32 %v1194, %v781
        %v1196 = vadd.f32 %v1195, %v789
        %v1197 = vadd.f32 %v1196, %v797
        %v1198 = vadd.f32 %v1197, %v805
        %v1199 = vadd.f32 %v1198, %v813
        %v1200 = vadd.f32 %v1199, %v821
        %v1201 = vadd.f32 %v1200, %v829
        %v1202 = vadd.f32 %v1201, %v837
        %v1203 = vadd.f32 %v1202, %v845
        %v1204 = vadd.f32 %v1203, %v853
        %v1205 = vadd.f32 %v1204, %v861
        %v1206 = vadd.f32 %v1205, %v869
        %v1207 = vadd.f32 %v1206, %v877
        %v1208 = vadd.f32 %v1207, %v885
        %v1209 = vadd.f32 %v1208, %v893
        %v1210 = vadd.f32 %v1209, %v901
        %v1211 = vadd.f32 %v1210, %v909
        %v1212 = vadd.f32 %v1211, %v917
        %v1213 = vadd.f32 %v1212, %v925
        %v1214 = vadd.f32 %v1213, %v933
        %v1215 = vadd.f32 %v1214, %v941
        %v1216 = vadd.f32 %v1215, %v949
        %v1217 = vadd.f32 %v1216, %v957
        %v1218 = vadd.f32 %v1217, %v965
        %v1219 = vadd.f32 %v1218, %v973
        %v1220 = vadd.f32 %v1219, %v981
        %v1221 = vadd.f32 %v1220, %v989
        %v1222 = vadd.f32 %v1221, %v997
        %v1223 = vadd.f32 %v1222, %v1005
        %v1224 = vadd.f32 %v758, %v766
        %v1225 = vadd.f32 %v1224, %v774
        %v1226 = vadd.f32 %v1225, %v782
        %v1227 = vadd.f32 %v1226, %v790
        %v1228 = vadd.f32 %v1227, %v798
        %v1229 = vadd.f32 %v1228, %v806
        %v1230 = vadd.f32 %v1229, %v814
        %v1231 = vadd.f32 %v1230, %v822
        %v1232 = vadd.f32 %v1231, %v830
        %v1233 = vadd.f32 %v1232, %v838
        %v1234 = vadd.f32 %v1233, %v846
        %v1235 = vadd.f32 %v1234, %v854
        %v1236 = vadd.f32 %v1235, %v862
        %v1237 = vadd.f32 %v1236, %v870
        %v1238 = vadd.f32 %v1237, %v878
        %v1239 = vadd.f32 %v1238, %v886
        %v1240 = vadd.f32 %v1239, %v894
        %v1241 = vadd.f32 %v1240, %v902
        %v1242 = vadd.f32 %v1241, %v910
        %v1243 = vadd.f32 %v1242, %v918
        %v1244 = vadd.f32 %v1243, %v926
        %v1245 = vadd.f32 %v1244, %v934
        %v1246 = vadd.f32 %v1245, %v942
        %v1247 = vadd.f32 %v1246, %v950
        %v1248 = vadd.f32 %v1247, %v958
        %v1249 = vadd.f32 %v1248, %v966
        %v1250 = vadd.f32 %v1249, %v974
        %v1251 = vadd.f32 %v1250, %v982
        %v1252 = vadd.f32 %v1251, %v990
        %v1253 = vadd.f32 %v1252, %v998
        %v1254 = vadd.f32 %v1253, %v1006
        %v1255 = vadd.f32 %v743, %v1037
        %v1256 = vadd.f32 %v744, %v1068
        %v1257 = vadd.f32 %v745, %v1099
        %v1258 = vadd.f32 %v746, %v1130
        %v1259 = vadd.f32 %v747, %v1161
        %v1260 = vadd.f32 %v748, %v1192
        %v1261 = vadd.f32 %v749, %v1223
        %v1262 = vadd.f32 %v750, %v1254
        %1263 = vst [vmem:[%s191] sm:$0xff] %v1255
        %1264 = vst [vmem:[%s191 + $0x8] sm:$0xff] %v1256
        %1265 = vst [vmem:[%s191 + $0x10] sm:$0xff] %v1257
        %1266 = vst [vmem:[%s191 + $0x18] sm:$0xff] %v1258
        %1267 = vst [vmem:[%s191 + $0x20] sm:$0xff] %v1259
        %1268 = vst [vmem:[%s191 + $0x28] sm:$0xff] %v1260
        %1269 = vst [vmem:[%s191 + $0x30] sm:$0xff] %v1261
        %1270 = vst [vmem:[%s191 + $0x38] sm:$0xff] %v1262
        %s1271 = sand.u32 %s73, 1
        %s1272 = scalar_lea.sflag [#allocation4], %s1271
        %s1273 = sand.u32 %s73, 1
        %s1274 = smul.addr %s1273, 64
        %s1275 = scalar_lea.vmem [#allocation5], %s1274
        %s1276 = sand.u32 %s99, 1
        %s1277 = scalar_lea.sflag [#allocation7], %s1276
        %s1278 = sand.u32 %s99, 1
        %s1279 = smul.addr %s1278, 64
        %s1280 = scalar_lea.vmem [#allocation6], %s1279
        // Predicated region
        $region33: #{tpu_custom_call.1} parent=23 // pred_check
          %p1281 = pneg %p83
        $region34: #{tpu_custom_call.1} parent=23 // pred_check_branch
          %1283 = sbr.rel (%p1281) target = $region36
        $region35: #{tpu_custom_call.1} parent=23 // pred_region
          %s1285 = ssub.s32 1024, 1024
          %1286 = vsyncadd %s1272, %s1285
          %s1287 = smul.addr %s27, 8
          %s1288 = smul.addr %s1287, 128
          %s1289 = scalar_lea.hbm %s1, %s1288
          %s1291 = sshll.u32 %s1275, 4
          %s1292 = int_to_ptr.vmem [resolvable:$true] %s1291
          %1294 = dma.vmem_to_hbm [thread:$0]  %s1292, 1024, %s1289, %s1272
        $region36: #{tpu_custom_call.1} parent=23 // pred_fallthru
          _
        // Predicated region
        $region37: #{tpu_custom_call.1} parent=23 // pred_check
          %p1295 = pneg %p109
        $region38: #{tpu_custom_call.1} parent=23 // pred_check_branch
          %1297 = sbr.rel (%p1295) target = $region40
        $region39: #{tpu_custom_call.1} parent=23 // pred_region
          %s1299 = ssub.s32 1024, 1024
          %1300 = vsyncadd %s1277, %s1299
          %s1301 = smul.addr %s27, 8
          %s1302 = smul.addr %s1301, 128
          %s1303 = scalar_lea.hbm %s2, %s1302
          %s1305 = sshll.u32 %s1280, 4
          %s1306 = int_to_ptr.vmem [resolvable:$true] %s1305
          %1308 = dma.vmem_to_hbm [thread:$0]  %s1306, 1024, %s1303, %s1277
        $region40: #{tpu_custom_call.1} parent=23 // pred_fallthru
          _
      $region24: #{tpu_custom_call.1} parent=5 // pred_fallthru
        _
      %p1309 = scmp.le.s32.totalorder 2, %s18
      // Predicated region
      $region41: #{tpu_custom_call.1} parent=5 // pred_check
        %p1310 = pneg %p1309
      $region42: #{tpu_custom_call.1} parent=5 // pred_check_branch
        %1312 = sbr.rel (%p1310) target = $region44
      $region43: #{tpu_custom_call.1} parent=5 // pred_region
        %s1313 = ssub.s32 %s18, 2
        // Predicated region
        $region45: #{tpu_custom_call.1} parent=43 // pred_check
          %p1314 = pneg %p89
        $region46: #{tpu_custom_call.1} parent=43 // pred_check_branch
          %1316 = sbr.rel (%p1314) target = $region48
        $region47: #{tpu_custom_call.1} parent=43 // pred_region
          %s1317 = sand.u32 %s74, 1
          %s1318 = scalar_lea.sflag [#allocation4], %s1317
          %s1319 = sand.u32 %s74, 1
          %s1320 = smul.addr %s1319, 64
          %s1321 = scalar_lea.vmem [#allocation5], %s1320
          %1322 = dma.done %s1318, 1024
        $region48: #{tpu_custom_call.1} parent=43 // pred_fallthru
          _
        // Predicated region
        $region49: #{tpu_custom_call.1} parent=43 // pred_check
          %p1323 = pneg %p115
        $region50: #{tpu_custom_call.1} parent=43 // pred_check_branch
          %1325 = sbr.rel (%p1323) target = $region52
        $region51: #{tpu_custom_call.1} parent=43 // pred_region
          %s1326 = sand.u32 %s100, 1
          %s1327 = scalar_lea.sflag [#allocation7], %s1326
          %s1328 = sand.u32 %s100, 1
          %s1329 = smul.addr %s1328, 64
          %s1330 = scalar_lea.vmem [#allocation6], %s1329
          %1331 = dma.done %s1327, 1024
        $region52: #{tpu_custom_call.1} parent=43 // pred_fallthru
          _
      $region44: #{tpu_custom_call.1} parent=5 // pred_fallthru
        _
    $region6: #{tpu_custom_call.1} parent=1 // loop_footer
      %s22 = sadd.s32 1, %s18
    $region7: #{tpu_custom_call.1} parent=1 // loop_footer_branch
      %17 = sbr.rel target = $region3
    $region8: #{tpu_custom_call.1} parent=1 // loop_exit
      _
    %1332 = vsyncpa [#allocation3], 1
    %s1333 = scalar_lea.sflag [#allocation3], 1
    %1334 = vsyncpa %s1333, 1
    %1335 = vsyncpa [#allocation4], 1
    %s1336 = scalar_lea.sflag [#allocation4], 1
    %1337 = vsyncpa %s1336, 1
    %1338 = vsyncpa [#allocation7], 1
    %s1339 = scalar_lea.sflag [#allocation7], 1
    %1340 = vsyncpa %s1339, 1

</llo_original>
